<compile_context>
chip_gen: v7x
topology: tpu7x:2x2x1
jax: 0.10.0
libtpu: 0.0.40
codegen_flags: <defaults>
</compile_context>

<pallas_src>
import math

import jax
import jax.numpy as jnp
from jax.experimental import pallas as pl
from jax.experimental.pallas import tpu as pltpu


def _ex_linear_kernel(x_ref, xex_ref, wbd_ref, w2bd_ref, bp_ref, o_ref):
    # x_ref    : (TB, TL)        lane-folded X tile (TL lanes = folded (group, s, c_out))
    # xex_ref  : (TB, G*ex_dim)  packed X_ex rows (G consecutive (b,t) groups per row)
    # wbd_ref  : (TL, TL)        block-diagonal fold of the Linear's X-part weight (resident)
    # w2bd_ref : (G*ex_dim, TL)  lane-tile slice of the block-diag X_ex-part weight
    # bp_ref   : (1, TL)         lane-tiled bias (f32, resident)
    # o_ref    : (TB, TL)        lane-folded output tile
    x = x_ref[...]
    acc = jnp.dot(x, wbd_ref[...], preferred_element_type=jnp.float32)
    # X_ex contribution: the broadcast over S positions (and the packing of G
    # groups per row) is encoded in w2bd's block structure -> one tiny matmul.
    acc = acc + jnp.dot(xex_ref[...], w2bd_ref[...], preferred_element_type=jnp.float32)
    acc = acc + bp_ref[...]                                           # sublane-broadcast bias
    o_ref[...] = (acc + x.astype(jnp.float32)).astype(o_ref.dtype)    # residual (+ X)


def _round_up(x, m):
    return (x + m - 1) // m * m


def _pick_group_fold(l_group, n_groups):
    """Number of consecutive (b, t) groups packed per folded row so the lane
    extent is a multiple of 128 (lane-dense, unmasked vector stores)."""
    if l_group % 128 == 0:
        return 1
    g = 128 // math.gcd(l_group, 128)
    if n_groups % g == 0:
        return g
    return 1   # fall back: accept a sub-128 / unaligned lane extent


def _pick_lane_tile(l_full, c_out, cap):
    """Lane-tile size: multiple of lcm(128, c_out) dividing l_full, <= cap if possible."""
    base = (128 * c_out) // math.gcd(128, c_out)     # lcm(128, c_out)
    if l_full <= cap or l_full % base != 0:
        return l_full                                # single full-extent tile
    best = None
    t = base
    while t <= cap:
        if l_full % t == 0:
            best = t
        t += base
    if best is not None:
        return best
    # no divisor <= cap: smallest dividing multiple of base (bounded by l_full)
    t = base
    while l_full % t != 0:
        t += base
    return t


def ex_linear_forward(X, X_ex, W, b, *, lane_tile_cap=128, row_tile_bytes=4 << 20):
    """Pallas forward of ex_Linear.

    X    : (B, T, S, c_out)
    X_ex : (B, T, ex_dim)
    W    : (ex_c_out, c_out + ex_dim)   nn.Linear weight (out_features, in_features)
    b    : (ex_c_out,)                  nn.Linear bias
    returns (B, T, S, ex_c_out)
    """
    B, T, S, c_out = X.shape
    ex_dim = X_ex.shape[-1]
    ex_c_out = W.shape[0]
    assert W.shape[1] == c_out + ex_dim
    assert ex_c_out == c_out, "residual '+ X' requires ex_c_out == c_out"

    BT = B * T
    dt = X.dtype
    itemsize = jnp.dtype(dt).itemsize

    # ---- lane folding (contiguous reshapes only; no HBM broadcast/pad) ------------
    l_group = S * c_out                       # folded lanes per (b, t) group
    g = _pick_group_fold(l_group, BT)         # groups packed per row (lane-dense)
    rows = BT // g
    l_full = g * l_group

    xf = X.reshape(rows, l_full)
    xex2 = X_ex.reshape(rows, g * ex_dim).astype(dt)

    # ---- tiling --------------------------------------------------------------------
    tl = _pick_lane_tile(l_full, c_out, lane_tile_cap)
    assert tl <= 2048, (
        f"folded lane tile {tl} too large; resident block-diagonal weight would "
        f"not fit VMEM (S*c_out={l_group})")
    n_lane = pl.cdiv(l_full, tl)

    sub = max(8, 32 // itemsize)              # native sublane tile (8 f32 / 16 bf16)
    tb = max(sub, (row_tile_bytes // (tl * itemsize)) // sub * sub)
    tb = min(tb, _round_up(rows, sub))
    # v7x megacore: keep >= 2 grid steps when the lane axis has only one tile.
    if n_lane == 1:
        half = _round_up(pl.cdiv(rows, 2), sub)
        if half < rows:
            tb = min(tb, half)

    # Double-buffered VMEM budget (in/out tiles + weights) kept well under the
    # 32 MiB scoped default (and v7x's 64 MiB physical VMEM).
    def _vmem_bytes(tb_):
        tiles = 2 * 2 * tb_ * tl * itemsize + 2 * tb_ * g * ex_dim * itemsize
        wts = 2 * (tl * tl + g * ex_dim * tl) * itemsize + 2 * tl * 4
        return tiles + wts

    while tb > sub and _vmem_bytes(tb) > (24 << 20):
        tb = max(sub, (tb // 2) // sub * sub)
    n_row = pl.cdiv(rows, tb)

    # ---- weight preprocessing (tiny, weights-only; mathematically == concat) -------
    W1 = W[:, :c_out].T.astype(jnp.float32)                     # (c_out, ex_c_out)
    W2 = W[:, c_out:].T.astype(jnp.float32)                     # (ex_dim, ex_c_out)
    Wbd = jnp.kron(jnp.eye(tl // c_out, dtype=jnp.float32), W1).astype(dt)   # (tl, tl)
    W2t = jnp.tile(W2, (1, S))                                  # (ex_dim, S*ex_c_out)
    W2bd = jnp.kron(jnp.eye(g, dtype=jnp.float32), W2t).astype(dt)           # (g*ex_dim, l_full)
    bp = jnp.tile(b.astype(jnp.float32), tl // ex_c_out).reshape(1, tl)      # (1, tl) f32

    flops = 2 * rows * l_full * (tl + g * ex_dim)
    bytes_accessed = (2 * rows * l_full + rows * g * ex_dim
                      + tl * tl + g * ex_dim * l_full) * itemsize + 4 * tl

    out = pl.pallas_call(
        _ex_linear_kernel,
        out_shape=jax.ShapeDtypeStruct((rows, l_full), dt),
        grid=(n_row, n_lane),
        in_specs=[
            pl.BlockSpec((tb, tl), lambda i, j: (i, j)),            # X (lane-folded)
            pl.BlockSpec((tb, g * ex_dim), lambda i, j: (i, 0)),    # X_ex (packed rows)
            pl.BlockSpec((tl, tl), lambda i, j: (0, 0)),            # block-diag W1 (resident)
            pl.BlockSpec((g * ex_dim, tl), lambda i, j: (0, j)),    # block-diag W2 slice
            pl.BlockSpec((1, tl), lambda i, j: (0, 0)),             # lane-tiled bias (resident)
        ],
        out_specs=pl.BlockSpec((tb, tl), lambda i, j: (i, j)),
        compiler_params=pltpu.CompilerParams(
            dimension_semantics=("parallel", "parallel")),
        cost_estimate=pl.CostEstimate(
            flops=int(flops), transcendentals=0,
            bytes_accessed=int(bytes_accessed)),
    )(xf, xex2, Wbd, W2bd, bp)

    return out.reshape(B, T, S, ex_c_out)


def _reference(X, X_ex, W, b):
    """Plain-JAX reference mirroring the torch forward."""
    B, T, S, _ = X.shape
    xex_b = jnp.broadcast_to(X_ex[:, :, None, :], (B, T, S, X_ex.shape[-1]))
    cat = jnp.concatenate([X, xex_b], axis=-1)
    return cat @ W.T + b + X


if __name__ == "__main__":
    key = jax.random.PRNGKey(0)
    B, T, S = 2, 8, 16                 # batch, outer seq, inner seq (X.shape[-2])
    c_out, ex_dim, ex_c_out = 4, 3, 4  # configs.c_out, configs.ex_dim, configs.ex_c_out

    k1, k2, k3, k4 = jax.random.split(key, 4)
    X = jax.random.normal(k1, (B, T, S, c_out), dtype=jnp.float32)
    X_ex = jax.random.normal(k2, (B, T, ex_dim), dtype=jnp.float32)

    # The module's __init__ zero-initializes the Linear parameters (initialize_to_zeros).
    W = jnp.zeros((ex_c_out, c_out + ex_dim), dtype=jnp.float32)
    b = jnp.zeros((ex_c_out,), dtype=jnp.float32)

    out = jax.block_until_ready(ex_linear_forward(X, X_ex, W, b))
    assert out.shape == (B, T, S, ex_c_out)
    assert jnp.allclose(out, _reference(X, X_ex, W, b), atol=1e-5)

    # Extra sanity check with non-zero parameters to actually exercise the matmul path.
    Wr = jax.random.normal(k3, (ex_c_out, c_out + ex_dim), dtype=jnp.float32)
    br = jax.random.normal(k4, (ex_c_out,), dtype=jnp.float32)
    out_r = jax.block_until_ready(ex_linear_forward(X, X_ex, Wr, br))
    assert jnp.allclose(out_r, _reference(X, X_ex, Wr, br), atol=1e-4)

    print("KERNEL_OK")
</pallas_src>

<mosaic_0001>
module attributes {stable_mosaic.version = 11 : i64} {
  func.func @_ex_linear_kernel(%arg0: i32, %arg1: i32, %arg2: memref<8x128xf32, #tpu.memory_space<vmem>>, %arg3: memref<8x6xf32, #tpu.memory_space<vmem>>, %arg4: memref<128x128xf32, #tpu.memory_space<vmem>>, %arg5: memref<6x128xf32, #tpu.memory_space<vmem>>, %arg6: memref<1x128xf32, #tpu.memory_space<vmem>>, %arg7: memref<8x128xf32, #tpu.memory_space<vmem>>) attributes {dimension_semantics = [#tpu.dimension_semantics<parallel>, #tpu.dimension_semantics<parallel>], iteration_bounds = array<i64: 1, 1>, scalar_prefetch = 0 : i64, scratch_operands = 0 : i64, tpu.core_type = #tpu.core_type<tc>, window_params = [{transform_indices = @transform_0, window_bounds = array<i64: 8, 128>}, {transform_indices = @transform_1, window_bounds = array<i64: 8, 6>}, {pipeline_mode = #tpu.pipeline_mode<synchronous>, transform_indices = @transform_2, window_bounds = array<i64: 128, 128>}, {transform_indices = @transform_3, window_bounds = array<i64: 6, 128>}, {pipeline_mode = #tpu.pipeline_mode<synchronous>, transform_indices = @transform_4, window_bounds = array<i64: 1, 128>}, {transform_indices = @transform_5, window_bounds = array<i64: 8, 128>}]} {
    %c0 = arith.constant 0 : index
    %c0_0 = arith.constant 0 : index
    %0 = vector.load %arg2[%c0, %c0_0] : memref<8x128xf32, #tpu.memory_space<vmem>>, vector<8x128xf32>
    %c0_1 = arith.constant 0 : index
    %c0_2 = arith.constant 0 : index
    %1 = vector.load %arg4[%c0_1, %c0_2] : memref<128x128xf32, #tpu.memory_space<vmem>>, vector<128x128xf32>
    %cst = arith.constant dense<0.000000e+00> : vector<8x128xf32>
    %2 = tpu.matmul %0, %1, %cst {dimension_numbers = #tpu.dot_dimension_numbers<[1], [0], [0], [1], [0, 0, 1, 1], [], []>} : vector<8x128xf32>, vector<128x128xf32>, vector<8x128xf32> -> vector<8x128xf32>
    %c0_3 = arith.constant 0 : index
    %c0_4 = arith.constant 0 : index
    %3 = vector.load %arg3[%c0_3, %c0_4] : memref<8x6xf32, #tpu.memory_space<vmem>>, vector<8x6xf32>
    %c0_5 = arith.constant 0 : index
    %c0_6 = arith.constant 0 : index
    %4 = vector.load %arg5[%c0_5, %c0_6] : memref<6x128xf32, #tpu.memory_space<vmem>>, vector<6x128xf32>
    %cst_7 = arith.constant dense<0.000000e+00> : vector<8x128xf32>
    %5 = tpu.matmul %3, %4, %cst_7 {dimension_numbers = #tpu.dot_dimension_numbers<[1], [0], [0], [1], [0, 0, 1, 1], [], []>} : vector<8x6xf32>, vector<6x128xf32>, vector<8x128xf32> -> vector<8x128xf32>
    %6 = arith.addf %2, %5 : vector<8x128xf32>
    %c0_8 = arith.constant 0 : index
    %c0_9 = arith.constant 0 : index
    %7 = vector.load %arg6[%c0_8, %c0_9] : memref<1x128xf32, #tpu.memory_space<vmem>>, vector<1x128xf32>
    %8 = vector.broadcast %7 : vector<1x128xf32> to vector<8x128xf32>
    %9 = arith.addf %6, %8 : vector<8x128xf32>
    %10 = arith.addf %9, %0 : vector<8x128xf32>
    %c0_10 = arith.constant 0 : index
    %c0_11 = arith.constant 0 : index
    %11 = vector.load %arg7[%c0_10, %c0_11] : memref<8x128xf32, #tpu.memory_space<vmem>>, vector<8x128xf32>
    tpu.vector_store %arg7[%c0_10, %c0_11], %10 {strides = array<i32>} : memref<8x128xf32, #tpu.memory_space<vmem>>, vector<8x128xf32>,
    return
  }
  func.func @transform_0(%arg0: i32, %arg1: i32) -> (i32, i32) {
    %c0_i32 = arith.constant 0 : i32
    return %arg0, %arg1 : i32, i32
  }
  func.func @transform_1(%arg0: i32, %arg1: i32) -> (i32, i32) {
    %c0_i32 = arith.constant 0 : i32
    %c0_i32_0 = arith.constant 0 : i32
    return %arg0, %c0_i32 : i32, i32
  }
  func.func @transform_2(%arg0: i32, %arg1: i32) -> (i32, i32) {
    %c0_i32 = arith.constant 0 : i32
    %c0_i32_0 = arith.constant 0 : i32
    %c0_i32_1 = arith.constant 0 : i32
    return %c0_i32, %c0_i32_0 : i32, i32
  }
  func.func @transform_3(%arg0: i32, %arg1: i32) -> (i32, i32) {
    %c0_i32 = arith.constant 0 : i32
    %c0_i32_0 = arith.constant 0 : i32
    return %c0_i32, %arg1 : i32, i32
  }
  func.func @transform_4(%arg0: i32, %arg1: i32) -> (i32, i32) {
    %c0_i32 = arith.constant 0 : i32
    %c0_i32_0 = arith.constant 0 : i32
    %c0_i32_1 = arith.constant 0 : i32
    return %c0_i32, %c0_i32_0 : i32, i32
  }
  func.func @transform_5(%arg0: i32, %arg1: i32) -> (i32, i32) {
    %c0_i32 = arith.constant 0 : i32
    return %arg0, %arg1 : i32, i32
  }
}

</mosaic_0001>

<llo_original>
// kernel: tpu_custom_call.1
$region0: #{tpu_custom_call.1}
  #allocation0 [shape = 'u32[]', space=smem, size = 0x4, offset = 0x4, fixed_abs, tag = 'smem constant byte address 0x4 - core index']
  #allocation1 [shape = 'u32[144,128]{1,0:T(1,128)}', space=vmem, size = 0x12000, scoped, tag = 'internal scratch']
  %s0 = inlined_call_operand.hbm [shape: f32[8,128], index: 0, kind: input, shape index: {}]
  %s1 = inlined_call_operand.hbm [shape: f32[8,6], index: 1, kind: input, shape index: {}]
  %s2 = inlined_call_operand.hbm [shape: f32[128,128], index: 2, kind: input, shape index: {}]
  %s3 = inlined_call_operand.vmem [shape: f32[6,128], index: 3, kind: input, shape index: {}]
  %s4 = inlined_call_operand.vmem [shape: f32[1,128], index: 4, kind: input, shape index: {}]
  %s5 = inlined_call_operand.hbm [shape: f32[8,128], index: 5, kind: output, shape index: {}]
  %s6 = sld [smem:[#allocation0]]
  $region42: #{tpu_custom_call.1} parent=0
    _
  %s8 = ssub.s32 1, %s6
  %s9 = scalar_select 0, %s8, %s6
  $region1: #{tpu_custom_call.1} parent=0
    #allocation2 [shape = 'u8[4096]{0}', space=vmem, size = 0x1000, scoped, tag = 'input window, operand 0, single buffered']
    #allocation3 [shape = 's32[1]{0}', space=sflag, size = 0x4, scoped, tag = 'scoped memory for tpu_custom_call.1']
    #allocation4 [shape = 's32[1]{0}', space=sflag, size = 0x4, scoped, tag = 'scoped memory for tpu_custom_call.1']
    #allocation5 [shape = 'u8[4096]{0}', space=vmem, size = 0x1000, scoped, tag = 'input window, operand 1, single buffered']
    #allocation6 [shape = 's32[1]{0}', space=sflag, size = 0x4, scoped, tag = 'scoped memory for tpu_custom_call.1']
    #allocation7 [shape = 'u8[65536]{0}', space=vmem, size = 0x10000, scoped, tag = 'input window, operand 2, single buffered']
    #allocation8 [shape = 'u8[4096]{0}', space=vmem, size = 0x1000, scoped, tag = 'output window, operand 0, single buffered']
    %10 = vsyncpa [#allocation3], 0
    %11 = vsyncpa [#allocation6], 0
    %12 = vsyncpa [#allocation4], 0
    // Predicated region
    $region2: #{tpu_custom_call.1} parent=1 // pred_check
      _
    $region3: #{tpu_custom_call.1} parent=1 // pred_check_branch
      %14 = sbr.rel (0) target = $region5
    $region4: #{tpu_custom_call.1} parent=1 // pred_region
      %s16 = ssub.s32 128, 128
      %17 = vsyncadd [#allocation3], %s16
      %s19 = sshll.u32 [#allocation2], 4
      %s20 = int_to_ptr.vmem [resolvable:$true] %s19
      %22 = dma.hbm_to_vmem [thread:$0]  %s0, 128, %s20, [#allocation3]
    $region5: #{tpu_custom_call.1} parent=1 // pred_fallthru
      _
    // Predicated region
    $region6: #{tpu_custom_call.1} parent=1 // pred_check
      _
    $region7: #{tpu_custom_call.1} parent=1 // pred_check_branch
      %24 = sbr.rel (0) target = $region9
    $region8: #{tpu_custom_call.1} parent=1 // pred_region
      %s26 = ssub.s32 128, 128
      %27 = vsyncadd [#allocation6], %s26
      %s29 = sshll.u32 [#allocation5], 4
      %s30 = int_to_ptr.vmem [resolvable:$true] %s29
      %32 = dma.hbm_to_vmem [thread:$0]  %s1, 128, %s30, [#allocation6]
    $region9: #{tpu_custom_call.1} parent=1 // pred_fallthru
      _
    // Predicated region
    $region10: #{tpu_custom_call.1} parent=1 // pred_check
      _
    $region11: #{tpu_custom_call.1} parent=1 // pred_check_branch
      %34 = sbr.rel (0) target = $region13
    $region12: #{tpu_custom_call.1} parent=1 // pred_region
      %s36 = ssub.s32 2048, 2048
      %37 = vsyncadd [#allocation6], %s36
      %s38 = sshll.u32 [#allocation7], 4
      %s39 = int_to_ptr.vmem [resolvable:$true] %s38
      %44 = dma.hbm_to_vmem [thread:$0]  %s2, 2048, %s39, [#allocation6], 128, 128, 8
    $region13: #{tpu_custom_call.1} parent=1 // pred_fallthru
      _
    // Predicated region
    $region14: #{tpu_custom_call.1} parent=1 // pred_check
      _
    $region15: #{tpu_custom_call.1} parent=1 // pred_check_branch
      %46 = sbr.rel (0) target = $region17
    $region16: #{tpu_custom_call.1} parent=1 // pred_region
      _
    $region17: #{tpu_custom_call.1} parent=1 // pred_fallthru
      _
    // Predicated region
    $region18: #{tpu_custom_call.1} parent=1 // pred_check
      _
    $region19: #{tpu_custom_call.1} parent=1 // pred_check_branch
      %48 = sbr.rel (0) target = $region21
    $region20: #{tpu_custom_call.1} parent=1 // pred_region
      _
    $region21: #{tpu_custom_call.1} parent=1 // pred_fallthru
      _
    // Predicated region
    $region22: #{tpu_custom_call.1} parent=1 // pred_check
      _
    $region23: #{tpu_custom_call.1} parent=1 // pred_check_branch
      %50 = sbr.rel (0) target = $region25
    $region24: #{tpu_custom_call.1} parent=1 // pred_region
      %51 = dma.done [#allocation3], 128
    $region25: #{tpu_custom_call.1} parent=1 // pred_fallthru
      _
    // Predicated region
    $region26: #{tpu_custom_call.1} parent=1 // pred_check
      _
    $region27: #{tpu_custom_call.1} parent=1 // pred_check_branch
      %53 = sbr.rel (0) target = $region29
    $region28: #{tpu_custom_call.1} parent=1 // pred_region
      %54 = dma.done [#allocation6], 128
    $region29: #{tpu_custom_call.1} parent=1 // pred_fallthru
      _
    // Predicated region
    $region30: #{tpu_custom_call.1} parent=1 // pred_check
      _
    $region31: #{tpu_custom_call.1} parent=1 // pred_check_branch
      %56 = sbr.rel (0) target = $region33
    $region32: #{tpu_custom_call.1} parent=1 // pred_region
      %57 = dma.done [#allocation6], 2048
    $region33: #{tpu_custom_call.1} parent=1 // pred_fallthru
      _
    %v58 = vld [vmem:[#allocation2] sm:$0xff]
    %v59 = vld [vmem:[#allocation7] sm:$0xff]
    %v60 = vld [vmem:[#allocation7 + $0x8] sm:$0xff]
    %v61 = vld [vmem:[#allocation7 + $0x10] sm:$0xff]
    %v62 = vld [vmem:[#allocation7 + $0x18] sm:$0xff]
    %v63 = vld [vmem:[#allocation7 + $0x20] sm:$0xff]
    %v64 = vld [vmem:[#allocation7 + $0x28] sm:$0xff]
    %v65 = vld [vmem:[#allocation7 + $0x30] sm:$0xff]
    %v66 = vld [vmem:[#allocation7 + $0x38] sm:$0xff]
    %v67 = vld [vmem:[#allocation7 + $0x40] sm:$0xff]
    %v68 = vld [vmem:[#allocation7 + $0x48] sm:$0xff]
    %v69 = vld [vmem:[#allocation7 + $0x50] sm:$0xff]
    %v70 = vld [vmem:[#allocation7 + $0x58] sm:$0xff]
    %v71 = vld [vmem:[#allocation7 + $0x60] sm:$0xff]
    %v72 = vld [vmem:[#allocation7 + $0x68] sm:$0xff]
    %v73 = vld [vmem:[#allocation7 + $0x70] sm:$0xff]
    %v74 = vld [vmem:[#allocation7 + $0x78] sm:$0xff]
    %v75 = vld [vmem:[#allocation5] sm:$0xff]
    %v76 = vld [vmem:[%s3] sm:$0x3f]
    %vm77 = vcmask 48128
    %v79 = vsel %vm77, %v75, 0
    %vm81 = vcmask 1045504
    %v83 = vsel %vm81, %v76, 0
    %85 = vmatprep.subr.mxu0 0.0
    %86 = vmatpush1.msra.mxu0 %v83
    %87 = vmatprep.subr.mxu0 0.0
    %88 = vmatpush1.msra.mxu0 0.0
    %89 = vmatprep.subr.mxu0 0.0
    %90 = vmatpush1.msra.mxu0 0.0
    %91 = vmatprep.subr.mxu0 0.0
    %92 = vmatpush1.msra.mxu0 0.0
    %93 = vmatprep.subr.mxu0 0.0
    %94 = vmatpush1.msra.mxu0 0.0
    %95 = vmatprep.subr.mxu0 0.0
    %96 = vmatpush1.msra.mxu0 0.0
    %97 = vmatprep.subr.mxu0 0.0
    %98 = vmatpush1.msra.mxu0 0.0
    %99 = vmatprep.subr.mxu0 0.0
    %100 = vmatpush1.msra.mxu0 0.0
    %101 = vmatprep.subr.mxu0 0.0
    %102 = vmatpush1.msra.mxu0 0.0
    %103 = vmatprep.subr.mxu0 0.0
    %104 = vmatpush1.msra.mxu0 0.0
    %105 = vmatprep.subr.mxu0 0.0
    %106 = vmatpush1.msra.mxu0 0.0
    %107 = vmatprep.subr.mxu0 0.0
    %108 = vmatpush1.msra.mxu0 0.0
    %109 = vmatprep.subr.mxu0 0.0
    %110 = vmatpush1.msra.mxu0 0.0
    %111 = vmatprep.subr.mxu0 0.0
    %112 = vmatpush1.msra.mxu0 0.0
    %113 = vmatprep.subr.mxu0 0.0
    %114 = vmatpush1.msra.mxu0 0.0
    %115 = vmatprep.subr.mxu0 0.0
    %116 = vmatpush1.msra.mxu0 0.0
    %117 = vmatprep.subr.mxu0 0.0
    %118 = vmatpush1.msra.mxu0 0.0
    %119 = vmatprep.subr.mxu0 0.0
    %120 = vmatpush1.msra.mxu0 0.0
    %121 = vmatprep.subr.mxu0 0.0
    %122 = vmatpush1.msra.mxu0 0.0
    %123 = vmatprep.subr.mxu0 0.0
    %124 = vmatpush1.msra.mxu0 0.0
    %125 = vmatprep.subr.mxu0 0.0
    %126 = vmatpush1.msra.mxu0 0.0
    %127 = vmatprep.subr.mxu0 0.0
    %128 = vmatpush1.msra.mxu0 0.0
    %129 = vmatprep.subr.mxu0 0.0
    %130 = vmatpush1.msra.mxu0 0.0
    %131 = vmatprep.subr.mxu0 0.0
    %132 = vmatpush1.msra.mxu0 0.0
    %133 = vmatprep.subr.mxu0 0.0
    %134 = vmatpush1.msra.mxu0 0.0
    %135 = vmatprep.subr.mxu0 0.0
    %136 = vmatpush1.msra.mxu0 0.0
    %137 = vmatprep.subr.mxu0 0.0
    %138 = vmatpush1.msra.mxu0 0.0
    %139 = vmatprep.subr.mxu0 0.0
    %140 = vmatpush1.msra.mxu0 0.0
    %141 = vmatprep.subr.mxu0 0.0
    %142 = vmatpush1.msra.mxu0 0.0
    %143 = vmatprep.subr.mxu0 0.0
    %144 = vmatpush1.msra.mxu0 0.0
    %145 = vmatprep.subr.mxu0 0.0
    %146 = vmatpush1.msra.mxu0 0.0
    %147 = vmatprep.subr.mxu0 0.0
    %148 = vmatpush1.msra.mxu0 0.0
    %149 = vmatprep.mubr.f32.mxu0 0.0
    %150 = vmatmul.mubr.f32.gmra.mrb[0].mxu0 %v79
    %v151 = vpop.f32.mrb[0].mxu0
    %v152 = vadd.f32 0.0, %v151
    %v153 = vpop.f32.mrb[0].mxu0
    %154 = vdwg.mxu0
    %155 = vmatprep.subr.mxu0 0.0
    %156 = vmatpush1.msra.mxu0 %v59
    %157 = vmatprep.subr.mxu0 0.0
    %158 = vmatpush1.msra.mxu0 %v60
    %159 = vmatprep.subr.mxu0 0.0
    %160 = vmatpush1.msra.mxu0 %v61
    %161 = vmatprep.subr.mxu0 0.0
    %162 = vmatpush1.msra.mxu0 %v62
    %163 = vmatprep.subr.mxu0 0.0
    %164 = vmatpush1.msra.mxu0 %v63
    %165 = vmatprep.subr.mxu0 0.0
    %166 = vmatpush1.msra.mxu0 %v64
    %167 = vmatprep.subr.mxu0 0.0
    %168 = vmatpush1.msra.mxu0 %v65
    %169 = vmatprep.subr.mxu0 0.0
    %170 = vmatpush1.msra.mxu0 %v66
    %171 = vmatprep.subr.mxu0 0.0
    %172 = vmatpush1.msra.mxu0 %v67
    %173 = vmatprep.subr.mxu0 0.0
    %174 = vmatpush1.msra.mxu0 %v68
    %175 = vmatprep.subr.mxu0 0.0
    %176 = vmatpush1.msra.mxu0 %v69
    %177 = vmatprep.subr.mxu0 0.0
    %178 = vmatpush1.msra.mxu0 %v70
    %179 = vmatprep.subr.mxu0 0.0
    %180 = vmatpush1.msra.mxu0 %v71
    %181 = vmatprep.subr.mxu0 0.0
    %182 = vmatpush1.msra.mxu0 %v72
    %183 = vmatprep.subr.mxu0 0.0
    %184 = vmatpush1.msra.mxu0 %v73
    %185 = vmatprep.subr.mxu0 0.0
    %186 = vmatpush1.msra.mxu0 %v74
    %187 = vmatprep.subr.mxu0 0.0
    %188 = vmatpush1.msra.mxu0 0.0
    %189 = vmatprep.subr.mxu0 0.0
    %190 = vmatpush1.msra.mxu0 0.0
    %191 = vmatprep.subr.mxu0 0.0
    %192 = vmatpush1.msra.mxu0 0.0
    %193 = vmatprep.subr.mxu0 0.0
    %194 = vmatpush1.msra.mxu0 0.0
    %195 = vmatprep.subr.mxu0 0.0
    %196 = vmatpush1.msra.mxu0 0.0
    %197 = vmatprep.subr.mxu0 0.0
    %198 = vmatpush1.msra.mxu0 0.0
    %199 = vmatprep.subr.mxu0 0.0
    %200 = vmatpush1.msra.mxu0 0.0
    %201 = vmatprep.subr.mxu0 0.0
    %202 = vmatpush1.msra.mxu0 0.0
    %203 = vmatprep.subr.mxu0 0.0
    %204 = vmatpush1.msra.mxu0 0.0
    %205 = vmatprep.subr.mxu0 0.0
    %206 = vmatpush1.msra.mxu0 0.0
    %207 = vmatprep.subr.mxu0 0.0
    %208 = vmatpush1.msra.mxu0 0.0
    %209 = vmatprep.subr.mxu0 0.0
    %210 = vmatpush1.msra.mxu0 0.0
    %211 = vmatprep.subr.mxu0 0.0
    %212 = vmatpush1.msra.mxu0 0.0
    %213 = vmatprep.subr.mxu0 0.0
    %214 = vmatpush1.msra.mxu0 0.0
    %215 = vmatprep.subr.mxu0 0.0
    %216 = vmatpush1.msra.mxu0 0.0
    %217 = vmatprep.subr.mxu0 0.0
    %218 = vmatpush1.msra.mxu0 0.0
    %219 = vmatprep.mubr.f32.mxu0 0.0
    %220 = vmatmul.mubr.f32.gmra.mrb[0].mxu0 %v58
    %v221 = vpop.f32.mrb[0].mxu0
    %v222 = vadd.f32 %v152, %v221
    %v223 = vpop.f32.mrb[0].mxu0
    %224 = vdwg.mxu0
    %v225 = vld [vmem:[%s4] sm:$0x1]
    %v227 = vlaneseq
    %v228 = vshrl.u32 %v227, 7
    %v229 = vsub.s32 0, %v228
    %v230 = vrot.slane %v225, %v229
    %v232 = vadd.f32 %v222, %v230
    %v233 = vadd.f32 %v232, %v58
    %234 = vst [vmem:[#allocation8] sm:$0xff] %v233
    // Predicated region
    $region34: #{tpu_custom_call.1} parent=1 // pred_check
      _
    $region35: #{tpu_custom_call.1} parent=1 // pred_check_branch
      %236 = sbr.rel (0) target = $region37
    $region36: #{tpu_custom_call.1} parent=1 // pred_region
      %s238 = ssub.s32 128, 128
      %239 = vsyncadd [#allocation4], %s238
      %s241 = sshll.u32 [#allocation8], 4
      %s242 = int_to_ptr.vmem [resolvable:$true] %s241
      %244 = dma.vmem_to_hbm [thread:$0]  %s242, 128, %s5, [#allocation4]
    $region37: #{tpu_custom_call.1} parent=1 // pred_fallthru
      _
    // Predicated region
    $region38: #{tpu_custom_call.1} parent=1 // pred_check
      _
    $region39: #{tpu_custom_call.1} parent=1 // pred_check_branch
      %246 = sbr.rel (0) target = $region41
    $region40: #{tpu_custom_call.1} parent=1 // pred_region
      %247 = dma.done [#allocation4], 128
    $region41: #{tpu_custom_call.1} parent=1 // pred_fallthru
      _
    %248 = vsyncpa [#allocation3], 1
    %249 = vsyncpa [#allocation6], 1
    %250 = vsyncpa [#allocation4], 1

</llo_original>
